<compile_context>
chip_gen: v7x
topology: tpu7x:2x2x1
jax: 0.10.0
libtpu: 0.0.40
codegen_flags: <defaults>
</compile_context>

<pallas_src>
import jax
import jax.numpy as jnp
from jax.experimental import pallas as pl
from jax.experimental.pallas import tpu as pltpu

_MIN_TB = 16            # bf16 sublane packing for the batch (row) dimension
_VMEM_BUDGET = 44 << 20  # fits v7x's 64 MiB with headroom; v5e/v6e have 128 MiB


def _policy_kernel(x_ref, w1_ref, w2_ref, wh_ref, b12_ref, bh_ref,
                   feat_ref, heads_ref):
    # ---- shared MLP: two MXU matmuls (bf16 operands, f32 accumulation) ----
    h = jnp.dot(x_ref[...], w1_ref[...], preferred_element_type=jnp.float32)
    h = jnp.maximum(h + b12_ref[0:1, :], 0.0)                      # f32 elementwise

    feat = jnp.dot(h.astype(jnp.bfloat16), w2_ref[...],
                   preferred_element_type=jnp.float32)
    feat = jnp.maximum(feat + b12_ref[1:2, :], 0.0)

    # single bf16 copy of feat: written back AND reused as the head-matmul LHS
    feat_bf16 = feat.astype(jnp.bfloat16)
    feat_ref[...] = feat_bf16.astype(feat_ref.dtype)

    # ---- fused heads: one matmul produces [mean | log_std] ----------------
    raw = jnp.dot(feat_bf16, wh_ref[...], preferred_element_type=jnp.float32)
    raw = raw + bh_ref[...]                                        # [tb, 2A]

    a_half = wh_ref.shape[1] // 2
    if a_half % 128 == 0:
        # lane-aligned split: exp/clip touches only the log_std half
        heads_ref[:, :a_half] = raw[:, :a_half].astype(heads_ref.dtype)
        heads_ref[:, a_half:] = jnp.exp(
            jnp.clip(raw[:, a_half:], -20.0, 2.0)).astype(heads_ref.dtype)
    else:
        # small A: lane-iota select (clip bounds exp -> no overflow on mean half)
        col = jax.lax.broadcasted_iota(jnp.int32, raw.shape, 1)
        std = jnp.exp(jnp.clip(raw, -20.0, 2.0))
        heads_ref[...] = jnp.where(col >= a_half, std, raw).astype(heads_ref.dtype)


def _round_up(v, m):
    return -(-v // m) * m


def split_connect_policy_forward(x, params, tile_b=1024):
    """x: [B, obs_dim] float32 -> (mean [B,A] f32, std [B,A] f32, feat [B,latent] bf16)."""
    B, obs_dim = x.shape
    latent_dim = params["w2"].shape[1]
    action_dim = params["wm"].shape[1]
    two_a = 2 * action_dim

    # --- pack / cast parameters (wrapper-side, traced once under jit) ------
    w1 = params["w1"].astype(jnp.bfloat16)
    w2 = params["w2"].astype(jnp.bfloat16)
    wh = jnp.concatenate([params["wm"], params["ws"]], axis=1).astype(jnp.bfloat16)
    b12 = jnp.concatenate([params["b1"], params["b2"]], axis=0).astype(jnp.float32)
    bh = jnp.concatenate([params["bm"], params["bs"]], axis=1).astype(jnp.float32)

    # --- batch tiling (no wrapper-side pad; ragged last block is fine) -----
    tb = min(tile_b, B)
    if tb < B:
        tb = _round_up(tb, _MIN_TB)
    if B > 2 * _MIN_TB:
        # keep >= 2 grid steps so both v7x TensorCores get work
        tb = min(tb, _round_up(pl.cdiv(B, 2), _MIN_TB))

    w_bytes = (obs_dim * latent_dim + latent_dim * latent_dim + latent_dim * two_a) * 2
    b_bytes = (2 * latent_dim + two_a) * 4

    def _vmem_need(t):
        x_b = 2 * t * obs_dim * 2          # x tile, double-buffered, bf16
        feat_b = 2 * t * latent_dim * 2    # feat out, double-buffered, bf16
        heads_b = 2 * t * two_a * 4        # heads out, double-buffered, f32
        tmp_b = 3 * t * latent_dim * 4 + 2 * t * two_a * 4   # h/feat/raw f32 temps
        return x_b + feat_b + heads_b + w_bytes + b_bytes + tmp_b

    while tb > _MIN_TB and _vmem_need(tb) > _VMEM_BUDGET:
        tb = max(_MIN_TB, _round_up(tb // 2, _MIN_TB))

    n_blocks = pl.cdiv(B, tb)
    x_in = x.astype(jnp.bfloat16)

    const = lambda i: (0, 0)                   # weights/biases resident across grid
    single = pl.Buffered(1)                    # constant blocks: no double buffer
    grid_spec = pltpu.PrefetchScalarGridSpec(
        num_scalar_prefetch=0,
        grid=(n_blocks,),
        in_specs=[
            pl.BlockSpec((tb, obs_dim), lambda i: (i, 0)),        # x tile (pipelined)
            pl.BlockSpec((obs_dim, latent_dim), const, pipeline_mode=single),   # w1
            pl.BlockSpec((latent_dim, latent_dim), const, pipeline_mode=single),  # w2
            pl.BlockSpec((latent_dim, two_a), const, pipeline_mode=single),     # wm|ws
            pl.BlockSpec((2, latent_dim), const, pipeline_mode=single),         # b1|b2
            pl.BlockSpec((1, two_a), const, pipeline_mode=single),              # bm|bs
        ],
        out_specs=(
            pl.BlockSpec((tb, latent_dim), lambda i: (i, 0)),     # feat (bf16)
            pl.BlockSpec((tb, two_a), lambda i: (i, 0)),          # [mean | std] (f32)
        ),
    )

    flops = 2 * B * (obs_dim * latent_dim + latent_dim * latent_dim + latent_dim * two_a)
    bytes_accessed = (B * obs_dim * 2 + B * latent_dim * 2 + B * two_a * 4
                      + w_bytes + b_bytes)
    cost = pl.CostEstimate(flops=flops,
                           transcendentals=B * two_a,
                           bytes_accessed=bytes_accessed)

    feat, heads = pl.pallas_call(
        _policy_kernel,
        out_shape=(
            jax.ShapeDtypeStruct((B, latent_dim), jnp.bfloat16),
            jax.ShapeDtypeStruct((B, two_a), jnp.float32),
        ),
        grid_spec=grid_spec,
        compiler_params=pltpu.CompilerParams(
            dimension_semantics=("parallel",),
            vmem_limit_bytes=_VMEM_BUDGET,
        ),
        cost_estimate=cost,
    )(x_in, w1, w2, wh, b12, bh)

    # cheap column slices in plain JAX (kernel output stays lane-dense)
    mean = heads[:, :action_dim]
    std = heads[:, action_dim:]
    return mean, std, feat


def init_params(key, obs_dim, latent_dim, action_dim):
    """Deterministic synthetic init matching the module's parameter shapes.

    The mean / log_std heads are stored as full concatenated [latent, A]
    matrices (left-half columns / right-half columns), which is exactly what
    cat([left_head(feat), right_head(feat)], dim=-1) computes.
    """
    ks = jax.random.split(key, 8)
    s = 0.1
    return {
        "w1": s * jax.random.normal(ks[0], (obs_dim, latent_dim), jnp.float32),
        "b1": s * jax.random.normal(ks[1], (1, latent_dim), jnp.float32),
        "w2": s * jax.random.normal(ks[2], (latent_dim, latent_dim), jnp.float32),
        "b2": s * jax.random.normal(ks[3], (1, latent_dim), jnp.float32),
        "wm": s * jax.random.normal(ks[4], (latent_dim, action_dim), jnp.float32),
        "bm": s * jax.random.normal(ks[5], (1, action_dim), jnp.float32),
        "ws": s * jax.random.normal(ks[6], (latent_dim, action_dim), jnp.float32),
        "bs": s * jax.random.normal(ks[7], (1, action_dim), jnp.float32),
    }


def _reference(x, p):
    # pure-JAX f32 reference of the same forward
    h = jnp.maximum(x @ p["w1"] + p["b1"], 0.0)
    feat = jnp.maximum(h @ p["w2"] + p["b2"], 0.0)
    mean = feat @ p["wm"] + p["bm"]
    std = jnp.exp(jnp.clip(feat @ p["ws"] + p["bs"], -20.0, 2.0))
    return mean, std, feat


if __name__ == "__main__":
    # batch chosen as a multiple of 16 (bf16 sublane packing); action split 4+4
    B, OBS, LATENT, ACTION = 16, 32, 64, 8

    key = jax.random.PRNGKey(0)
    kx, kp = jax.random.split(key)
    x = jax.random.normal(kx, (B, OBS), jnp.float32)
    params = init_params(kp, OBS, LATENT, ACTION)

    mean, std, feat = split_connect_policy_forward(x, params)
    jax.block_until_ready((mean, std, feat))

    rm, rs, rf = _reference(x, params)
    assert mean.shape == (B, ACTION) and std.shape == (B, ACTION) and feat.shape == (B, LATENT)
    # bf16 matmul operands / bf16 feat writeback with f32 accumulation -> relaxed tol
    assert jnp.allclose(mean, rm, atol=4e-2, rtol=4e-2)
    assert jnp.allclose(std, rs, atol=4e-2, rtol=4e-2)
    assert jnp.allclose(feat.astype(jnp.float32), rf, atol=4e-2, rtol=4e-2)
    assert bool(jnp.all(std > 0.0))

    print("KERNEL_OK")
</pallas_src>

<mosaic_0001>
module attributes {stable_mosaic.version = 11 : i64} {
  func.func @_policy_kernel(%arg0: i32, %arg1: memref<16x32xbf16, #tpu.memory_space<vmem>>, %arg2: memref<32x64xbf16, #tpu.memory_space<vmem>>, %arg3: memref<64x64xbf16, #tpu.memory_space<vmem>>, %arg4: memref<64x16xbf16, #tpu.memory_space<vmem>>, %arg5: memref<2x64xf32, #tpu.memory_space<vmem>>, %arg6: memref<1x16xf32, #tpu.memory_space<vmem>>, %arg7: memref<16x64xbf16, #tpu.memory_space<vmem>>, %arg8: memref<16x16xf32, #tpu.memory_space<vmem>>) attributes {dimension_semantics = [#tpu.dimension_semantics<parallel>], iteration_bounds = array<i64: 1>, scalar_prefetch = 0 : i64, scratch_operands = 0 : i64, tpu.core_type = #tpu.core_type<tc>, window_params = [{transform_indices = @transform_0, window_bounds = array<i64: 16, 32>}, {pipeline_mode = #tpu.pipeline_mode<synchronous>, transform_indices = @transform_1, window_bounds = array<i64: 32, 64>}, {pipeline_mode = #tpu.pipeline_mode<synchronous>, transform_indices = @transform_2, window_bounds = array<i64: 64, 64>}, {pipeline_mode = #tpu.pipeline_mode<synchronous>, transform_indices = @transform_3, window_bounds = array<i64: 64, 16>}, {pipeline_mode = #tpu.pipeline_mode<synchronous>, transform_indices = @transform_4, window_bounds = array<i64: 2, 64>}, {pipeline_mode = #tpu.pipeline_mode<synchronous>, transform_indices = @transform_5, window_bounds = array<i64: 1, 16>}, {transform_indices = @transform_6, window_bounds = array<i64: 16, 64>}, {transform_indices = @transform_7, window_bounds = array<i64: 16, 16>}]} {
    %c0 = arith.constant 0 : index
    %c0_0 = arith.constant 0 : index
    %0 = vector.load %arg1[%c0, %c0_0] : memref<16x32xbf16, #tpu.memory_space<vmem>>, vector<16x32xbf16>
    %c0_1 = arith.constant 0 : index
    %c0_2 = arith.constant 0 : index
    %1 = vector.load %arg2[%c0_1, %c0_2] : memref<32x64xbf16, #tpu.memory_space<vmem>>, vector<32x64xbf16>
    %cst = arith.constant dense<0.000000e+00> : vector<16x64xf32>
    %2 = tpu.matmul %0, %1, %cst {dimension_numbers = #tpu.dot_dimension_numbers<[1], [0], [0], [1], [0, 0, 1, 1], [], []>} : vector<16x32xbf16>, vector<32x64xbf16>, vector<16x64xf32> -> vector<16x64xf32>
    %c0_3 = arith.constant 0 : index
    %c0_4 = arith.constant 0 : index
    %3 = vector.load %arg5[%c0_3, %c0_4] : memref<2x64xf32, #tpu.memory_space<vmem>>, vector<1x64xf32>
    %4 = vector.broadcast %3 : vector<1x64xf32> to vector<16x64xf32>
    %5 = arith.addf %2, %4 : vector<16x64xf32>
    %cst_5 = arith.constant 0.000000e+00 : f32
    %6 = vector.broadcast %cst_5 : f32 to vector<16x64xf32>
    %7 = arith.maximumf %5, %6 : vector<16x64xf32>
    %8 = arith.truncf %7 : vector<16x64xf32> to vector<16x64xbf16>
    %c0_6 = arith.constant 0 : index
    %c0_7 = arith.constant 0 : index
    %9 = vector.load %arg3[%c0_6, %c0_7] : memref<64x64xbf16, #tpu.memory_space<vmem>>, vector<64x64xbf16>
    %cst_8 = arith.constant dense<0.000000e+00> : vector<16x64xf32>
    %10 = tpu.matmul %8, %9, %cst_8 {dimension_numbers = #tpu.dot_dimension_numbers<[1], [0], [0], [1], [0, 0, 1, 1], [], []>} : vector<16x64xbf16>, vector<64x64xbf16>, vector<16x64xf32> -> vector<16x64xf32>
    %c1 = arith.constant 1 : index
    %c0_9 = arith.constant 0 : index
    %11 = vector.load %arg5[%c1, %c0_9] : memref<2x64xf32, #tpu.memory_space<vmem>>, vector<1x64xf32>
    %12 = vector.broadcast %11 : vector<1x64xf32> to vector<16x64xf32>
    %13 = arith.addf %10, %12 : vector<16x64xf32>
    %cst_10 = arith.constant 0.000000e+00 : f32
    %14 = vector.broadcast %cst_10 : f32 to vector<16x64xf32>
    %15 = arith.maximumf %13, %14 : vector<16x64xf32>
    %16 = arith.truncf %15 : vector<16x64xf32> to vector<16x64xbf16>
    %c0_11 = arith.constant 0 : index
    %c0_12 = arith.constant 0 : index
    %17 = vector.load %arg7[%c0_11, %c0_12] : memref<16x64xbf16, #tpu.memory_space<vmem>>, vector<16x64xbf16>
    tpu.vector_store %arg7[%c0_11, %c0_12], %16 {strides = array<i32>} : memref<16x64xbf16, #tpu.memory_space<vmem>>, vector<16x64xbf16>,
    %c0_13 = arith.constant 0 : index
    %c0_14 = arith.constant 0 : index
    %18 = vector.load %arg4[%c0_13, %c0_14] : memref<64x16xbf16, #tpu.memory_space<vmem>>, vector<64x16xbf16>
    %cst_15 = arith.constant dense<0.000000e+00> : vector<16x16xf32>
    %19 = tpu.matmul %16, %18, %cst_15 {dimension_numbers = #tpu.dot_dimension_numbers<[1], [0], [0], [1], [0, 0, 1, 1], [], []>} : vector<16x64xbf16>, vector<64x16xbf16>, vector<16x16xf32> -> vector<16x16xf32>
    %c0_16 = arith.constant 0 : index
    %c0_17 = arith.constant 0 : index
    %20 = vector.load %arg6[%c0_16, %c0_17] : memref<1x16xf32, #tpu.memory_space<vmem>>, vector<1x16xf32>
    %21 = vector.broadcast %20 : vector<1x16xf32> to vector<16x16xf32>
    %22 = arith.addf %19, %21 : vector<16x16xf32>
    %23 = tpu.iota {dimensions = array<i32: 1>} : vector<16x16xi32>
    %cst_18 = arith.constant -2.000000e+01 : f32
    %cst_19 = arith.constant 2.000000e+00 : f32
    %24 = vector.broadcast %cst_18 : f32 to vector<16x16xf32>
    %25 = arith.maximumf %24, %22 : vector<16x16xf32>
    %26 = vector.broadcast %cst_19 : f32 to vector<16x16xf32>
    %27 = arith.minimumf %26, %25 : vector<16x16xf32>
    %28 = math.exp %27 : vector<16x16xf32>
    %c8_i32 = arith.constant 8 : i32
    %29 = vector.broadcast %c8_i32 : i32 to vector<16x16xi32>
    %30 = arith.cmpi sge, %23, %29 : vector<16x16xi32>
    %31 = arith.select %30, %28, %22 : vector<16x16xi1>, vector<16x16xf32>
    %c0_20 = arith.constant 0 : index
    %c0_21 = arith.constant 0 : index
    %32 = vector.load %arg8[%c0_20, %c0_21] : memref<16x16xf32, #tpu.memory_space<vmem>>, vector<16x16xf32>
    tpu.vector_store %arg8[%c0_20, %c0_21], %31 {strides = array<i32>} : memref<16x16xf32, #tpu.memory_space<vmem>>, vector<16x16xf32>,
    return
  }
  func.func @transform_0(%arg0: i32) -> (i32, i32) {
    %c0_i32 = arith.constant 0 : i32
    %c0_i32_0 = arith.constant 0 : i32
    return %arg0, %c0_i32 : i32, i32
  }
  func.func @transform_1(%arg0: i32) -> (i32, i32) {
    %c0_i32 = arith.constant 0 : i32
    %c0_i32_0 = arith.constant 0 : i32
    %c0_i32_1 = arith.constant 0 : i32
    return %c0_i32, %c0_i32_0 : i32, i32
  }
  func.func @transform_2(%arg0: i32) -> (i32, i32) {
    %c0_i32 = arith.constant 0 : i32
    %c0_i32_0 = arith.constant 0 : i32
    %c0_i32_1 = arith.constant 0 : i32
    return %c0_i32, %c0_i32_0 : i32, i32
  }
  func.func @transform_3(%arg0: i32) -> (i32, i32) {
    %c0_i32 = arith.constant 0 : i32
    %c0_i32_0 = arith.constant 0 : i32
    %c0_i32_1 = arith.constant 0 : i32
    return %c0_i32, %c0_i32_0 : i32, i32
  }
  func.func @transform_4(%arg0: i32) -> (i32, i32) {
    %c0_i32 = arith.constant 0 : i32
    %c0_i32_0 = arith.constant 0 : i32
    %c0_i32_1 = arith.constant 0 : i32
    return %c0_i32, %c0_i32_0 : i32, i32
  }
  func.func @transform_5(%arg0: i32) -> (i32, i32) {
    %c0_i32 = arith.constant 0 : i32
    %c0_i32_0 = arith.constant 0 : i32
    %c0_i32_1 = arith.constant 0 : i32
    return %c0_i32, %c0_i32_0 : i32, i32
  }
  func.func @transform_6(%arg0: i32) -> (i32, i32) {
    %c0_i32 = arith.constant 0 : i32
    %c0_i32_0 = arith.constant 0 : i32
    return %arg0, %c0_i32 : i32, i32
  }
  func.func @transform_7(%arg0: i32) -> (i32, i32) {
    %c0_i32 = arith.constant 0 : i32
    %c0_i32_0 = arith.constant 0 : i32
    return %arg0, %c0_i32 : i32, i32
  }
}

</mosaic_0001>

<llo_original>
// kernel: tpu_custom_call.1
$region0: #{tpu_custom_call.1}
  #allocation0 [shape = 'u32[]', space=smem, size = 0x4, offset = 0x4, fixed_abs, tag = 'smem constant byte address 0x4 - core index']
  #allocation1 [shape = 'u32[144,128]{1,0:T(1,128)}', space=vmem, size = 0x12000, scoped, tag = 'internal scratch']
  %s0 = inlined_call_operand.vmem [shape: bf16[16,32], index: 0, kind: input, shape index: {}]
  %s1 = inlined_call_operand.hbm [shape: bf16[32,64], index: 1, kind: input, shape index: {}]
  %s2 = inlined_call_operand.vmem [shape: bf16[64,64], index: 2, kind: input, shape index: {}]
  %s3 = inlined_call_operand.vmem [shape: bf16[64,16], index: 3, kind: input, shape index: {}]
  %s4 = inlined_call_operand.vmem [shape: f32[2,64], index: 4, kind: input, shape index: {}]
  %s5 = inlined_call_operand.vmem [shape: f32[1,16], index: 5, kind: input, shape index: {}]
  %s6 = inlined_call_operand.hbm [shape: bf16[16,64], index: 6, kind: output, shape index: {0}]
  %s7 = inlined_call_operand.hbm [shape: f32[16,16], index: 7, kind: output, shape index: {1}]
  %8 = xla_tuple %s6, %s7
  %s9 = sld [smem:[#allocation0]]
  $region46: #{tpu_custom_call.1} parent=0
    _
  %s11 = ssub.s32 1, %s9
  %s12 = scalar_select 0, %s11, %s9
  $region1: #{tpu_custom_call.1} parent=0
    #allocation2 [shape = 'u8[8192]{0}', space=vmem, size = 0x2000, scoped, tag = 'input window, operand 1, single buffered']
    #allocation3 [shape = 's32[1]{0}', space=sflag, size = 0x4, scoped, tag = 'scoped memory for tpu_custom_call.1']
    #allocation4 [shape = 's32[1]{0}', space=sflag, size = 0x4, scoped, tag = 'scoped memory for tpu_custom_call.1']
    #allocation5 [shape = 'u8[4096]{0}', space=vmem, size = 0x1000, scoped, tag = 'output window, operand 0, single buffered']
    #allocation6 [shape = 'u8[8192]{0}', space=vmem, size = 0x2000, scoped, tag = 'output window, operand 1, single buffered']
    #allocation7 [shape = 's32[1]{0}', space=sflag, size = 0x4, scoped, tag = 'scoped memory for tpu_custom_call.1']
    %13 = vsyncpa [#allocation3], 0
    %14 = vsyncpa [#allocation4], 0
    %15 = vsyncpa [#allocation7], 0
    // Predicated region
    $region2: #{tpu_custom_call.1} parent=1 // pred_check
      _
    $region3: #{tpu_custom_call.1} parent=1 // pred_check_branch
      %17 = sbr.rel (0) target = $region5
    $region4: #{tpu_custom_call.1} parent=1 // pred_region
      _
    $region5: #{tpu_custom_call.1} parent=1 // pred_fallthru
      _
    // Predicated region
    $region6: #{tpu_custom_call.1} parent=1 // pred_check
      _
    $region7: #{tpu_custom_call.1} parent=1 // pred_check_branch
      %19 = sbr.rel (0) target = $region9
    $region8: #{tpu_custom_call.1} parent=1 // pred_region
      %s21 = ssub.s32 256, 256
      %22 = vsyncadd [#allocation3], %s21
      %s23 = sshll.u32 [#allocation2], 4
      %s24 = int_to_ptr.vmem [resolvable:$true] %s23
      %29 = dma.hbm_to_vmem [thread:$0]  %s1, 256, %s24, [#allocation3], 64, 64, 4
    $region9: #{tpu_custom_call.1} parent=1 // pred_fallthru
      _
    // Predicated region
    $region10: #{tpu_custom_call.1} parent=1 // pred_check
      _
    $region11: #{tpu_custom_call.1} parent=1 // pred_check_branch
      %31 = sbr.rel (0) target = $region13
    $region12: #{tpu_custom_call.1} parent=1 // pred_region
      _
    $region13: #{tpu_custom_call.1} parent=1 // pred_fallthru
      _
    // Predicated region
    $region14: #{tpu_custom_call.1} parent=1 // pred_check
      _
    $region15: #{tpu_custom_call.1} parent=1 // pred_check_branch
      %33 = sbr.rel (0) target = $region17
    $region16: #{tpu_custom_call.1} parent=1 // pred_region
      _
    $region17: #{tpu_custom_call.1} parent=1 // pred_fallthru
      _
    // Predicated region
    $region18: #{tpu_custom_call.1} parent=1 // pred_check
      _
    $region19: #{tpu_custom_call.1} parent=1 // pred_check_branch
      %35 = sbr.rel (0) target = $region21
    $region20: #{tpu_custom_call.1} parent=1 // pred_region
      _
    $region21: #{tpu_custom_call.1} parent=1 // pred_fallthru
      _
    // Predicated region
    $region22: #{tpu_custom_call.1} parent=1 // pred_check
      _
    $region23: #{tpu_custom_call.1} parent=1 // pred_check_branch
      %37 = sbr.rel (0) target = $region25
    $region24: #{tpu_custom_call.1} parent=1 // pred_region
      _
    $region25: #{tpu_custom_call.1} parent=1 // pred_fallthru
      _
    // Predicated region
    $region26: #{tpu_custom_call.1} parent=1 // pred_check
      _
    $region27: #{tpu_custom_call.1} parent=1 // pred_check_branch
      %39 = sbr.rel (0) target = $region29
    $region28: #{tpu_custom_call.1} parent=1 // pred_region
      %40 = dma.done [#allocation3], 256
    $region29: #{tpu_custom_call.1} parent=1 // pred_fallthru
      _
    %v42 = vld [vmem:[%s0] sm:$0xf]
    %v43 = vld [vmem:[%s0 + $0x4] sm:$0xf]
    %v44 = vld [vmem:[#allocation2] sm:$0xf]
    %v45 = vld [vmem:[#allocation2 + $0x4] sm:$0xf]
    %v46 = vld [vmem:[#allocation2 + $0x8] sm:$0xf]
    %v47 = vld [vmem:[#allocation2 + $0xc] sm:$0xf]
    %v48 = vld [vmem:[%s4] sm:$0x1]
    %v49 = vlaneseq
    %v50 = vshrl.u32 %v49, 7
    %v51 = vsub.s32 0, %v50
    %v52 = vrot.slane %v48, %v51
    %v55 = vunpack.c.l.b16 %v42
    %v56 = vunpack.c.l.b16 %v43
    %v57 = vpack.c.b16 %v56, %v55
    %v62 = vunpack.c.l.b16 %v44
    %v63 = vunpack.c.l.b16 %v45
    %v64 = vunpack.c.l.b16 %v46
    %v65 = vunpack.c.l.b16 %v47
    %v66 = vpack.c.b16 %v63, %v62
    %v67 = vpack.c.b16 %v65, %v64
    %vm70 = vcmask 261120
    %v72 = vsel %vm70, %v57, 0
    %74 = vmatprep.subr.bf16.mxu0 0
    %75 = vmatpush1.bf16.msra.mxu0 %v66
    %76 = vmatprep.subr.bf16.mxu0 0
    %77 = vmatpush1.bf16.msra.mxu0 %v67
    %78 = vmatprep.subr.bf16.mxu0 0
    %79 = vmatpush1.bf16.msra.mxu0 0
    %80 = vmatprep.subr.bf16.mxu0 0
    %81 = vmatpush1.bf16.msra.mxu0 0
    %82 = vmatprep.subr.bf16.mxu0 0
    %83 = vmatpush1.bf16.msra.mxu0 0
    %84 = vmatprep.subr.bf16.mxu0 0
    %85 = vmatpush1.bf16.msra.mxu0 0
    %86 = vmatprep.subr.bf16.mxu0 0
    %87 = vmatpush1.bf16.msra.mxu0 0
    %88 = vmatprep.subr.bf16.mxu0 0
    %89 = vmatpush1.bf16.msra.mxu0 0
    %90 = vmatprep.subr.bf16.mxu0 0
    %91 = vmatpush1.bf16.msra.mxu0 0
    %92 = vmatprep.subr.bf16.mxu0 0
    %93 = vmatpush1.bf16.msra.mxu0 0
    %94 = vmatprep.subr.bf16.mxu0 0
    %95 = vmatpush1.bf16.msra.mxu0 0
    %96 = vmatprep.subr.bf16.mxu0 0
    %97 = vmatpush1.bf16.msra.mxu0 0
    %98 = vmatprep.subr.bf16.mxu0 0
    %99 = vmatpush1.bf16.msra.mxu0 0
    %100 = vmatprep.subr.bf16.mxu0 0
    %101 = vmatpush1.bf16.msra.mxu0 0
    %102 = vmatprep.subr.bf16.mxu0 0
    %103 = vmatpush1.bf16.msra.mxu0 0
    %104 = vmatprep.subr.bf16.mxu0 0
    %105 = vmatpush1.bf16.msra.mxu0 0
    %106 = vmatprep.mubr.bf16.mxu0 0
    %107 = vmatmul.mubr.bf16.gmra.mrb[0].mxu0 %v72
    %v108 = vpop.f32.mrb[0].mxu0
    %v109 = vadd.f32 %v52, %v108
    %v110 = vpop.f32.mrb[0].mxu0
    %v111 = vpop.f32.mrb[0].mxu0
    %v112 = vadd.f32 %v52, %v111
    %v113 = vpop.f32.mrb[0].mxu0
    %114 = vdwg.mxu0
    %v115 = vmax.f32 %v109, 0.0
    %v116 = vmax.f32 %v112, 0.0
    %v117 = vpack.c.bf16 %v116, %v115
    %v118 = vld [vmem:[%s2] sm:$0xf]
    %v119 = vld [vmem:[%s2 + $0x4] sm:$0xf]
    %v120 = vld [vmem:[%s2 + $0x8] sm:$0xf]
    %v121 = vld [vmem:[%s2 + $0xc] sm:$0xf]
    %v122 = vld [vmem:[%s2 + $0x10] sm:$0xf]
    %v123 = vld [vmem:[%s2 + $0x14] sm:$0xf]
    %v124 = vld [vmem:[%s2 + $0x18] sm:$0xf]
    %v125 = vld [vmem:[%s2 + $0x1c] sm:$0xf]
    %v126 = vld [vmem:[%s4 + $0x1] sm:$0x1]
    %v127 = vlaneseq
    %v128 = vshrl.u32 %v127, 7
    %v129 = vsub.s32 0, %v128
    %v130 = vrot.slane %v126, %v129
    %v139 = vunpack.c.l.b16 %v118
    %v140 = vunpack.c.l.b16 %v119
    %v141 = vunpack.c.l.b16 %v120
    %v142 = vunpack.c.l.b16 %v121
    %v143 = vunpack.c.l.b16 %v122
    %v144 = vunpack.c.l.b16 %v123
    %v145 = vunpack.c.l.b16 %v124
    %v146 = vunpack.c.l.b16 %v125
    %v147 = vpack.c.b16 %v140, %v139
    %v148 = vpack.c.b16 %v142, %v141
    %v149 = vpack.c.b16 %v144, %v143
    %v150 = vpack.c.b16 %v146, %v145
    %vm155 = vcmask 523264
    %v157 = vsel %vm155, %v117, 0
    %159 = vmatprep.subr.bf16.mxu0 0
    %160 = vmatpush1.bf16.msra.mxu0 %v147
    %161 = vmatprep.subr.bf16.mxu0 0
    %162 = vmatpush1.bf16.msra.mxu0 %v148
    %163 = vmatprep.subr.bf16.mxu0 0
    %164 = vmatpush1.bf16.msra.mxu0 %v149
    %165 = vmatprep.subr.bf16.mxu0 0
    %166 = vmatpush1.bf16.msra.mxu0 %v150
    %167 = vmatprep.subr.bf16.mxu0 0
    %168 = vmatpush1.bf16.msra.mxu0 0
    %169 = vmatprep.subr.bf16.mxu0 0
    %170 = vmatpush1.bf16.msra.mxu0 0
    %171 = vmatprep.subr.bf16.mxu0 0
    %172 = vmatpush1.bf16.msra.mxu0 0
    %173 = vmatprep.subr.bf16.mxu0 0
    %174 = vmatpush1.bf16.msra.mxu0 0
    %175 = vmatprep.subr.bf16.mxu0 0
    %176 = vmatpush1.bf16.msra.mxu0 0
    %177 = vmatprep.subr.bf16.mxu0 0
    %178 = vmatpush1.bf16.msra.mxu0 0
    %179 = vmatprep.subr.bf16.mxu0 0
    %180 = vmatpush1.bf16.msra.mxu0 0
    %181 = vmatprep.subr.bf16.mxu0 0
    %182 = vmatpush1.bf16.msra.mxu0 0
    %183 = vmatprep.subr.bf16.mxu0 0
    %184 = vmatpush1.bf16.msra.mxu0 0
    %185 = vmatprep.subr.bf16.mxu0 0
    %186 = vmatpush1.bf16.msra.mxu0 0
    %187 = vmatprep.subr.bf16.mxu0 0
    %188 = vmatpush1.bf16.msra.mxu0 0
    %189 = vmatprep.subr.bf16.mxu0 0
    %190 = vmatpush1.bf16.msra.mxu0 0
    %191 = vmatprep.mubr.bf16.mxu0 0
    %192 = vmatmul.mubr.bf16.gmra.mrb[0].mxu0 %v157
    %v193 = vpop.f32.mrb[0].mxu0
    %v194 = vadd.f32 %v130, %v193
    %v195 = vpop.f32.mrb[0].mxu0
    %v196 = vpop.f32.mrb[0].mxu0
    %v197 = vadd.f32 %v130, %v196
    %v198 = vpop.f32.mrb[0].mxu0
    %199 = vdwg.mxu0
    %v200 = vmax.f32 %v194, 0.0
    %v201 = vmax.f32 %v197, 0.0
    %v202 = vpack.c.bf16 %v201, %v200
    %v204 = vunpack.c.l.b16 %v202
    %v205 = vunpack.c.h.b16 %v202
    %v206 = vpack.c.b16 %v204, %v204
    %v207 = vpack.c.b16 %v205, %v205
    %vm210 = vcmask 519168
    %211 = vst.msk [vmem:[#allocation5] sm:$0xf] %vm210, %v206
    %212 = vst.msk [vmem:[#allocation5 + $0x4] sm:$0xf] %vm210, %v207
    %v213 = vld [vmem:[%s3] sm:$0xf]
    %v214 = vld [vmem:[%s3 + $0x4] sm:$0xf]
    %v215 = vld [vmem:[%s3 + $0x8] sm:$0xf]
    %v216 = vld [vmem:[%s3 + $0xc] sm:$0xf]
    %v217 = vld [vmem:[%s3 + $0x10] sm:$0xf]
    %v218 = vld [vmem:[%s3 + $0x14] sm:$0xf]
    %v219 = vld [vmem:[%s3 + $0x18] sm:$0xf]
    %v220 = vld [vmem:[%s3 + $0x1c] sm:$0xf]
    %v221 = vld [vmem:[%s5] sm:$0x1]
    %v223 = vlaneseq
    %v224 = vshrl.u32 %v223, 7
    %v225 = vsub.s32 0, %v224
    %v226 = vrot.slane %v221, %v225
    %v236 = vunpack.c.l.b16 %v213
    %v237 = vunpack.c.l.b16 %v214
    %v238 = vunpack.c.l.b16 %v215
    %v239 = vunpack.c.l.b16 %v216
    %v240 = vunpack.c.l.b16 %v217
    %v241 = vunpack.c.l.b16 %v218
    %v242 = vunpack.c.l.b16 %v219
    %v243 = vunpack.c.l.b16 %v220
    %v244 = vpack.c.b16 %v237, %v236
    %v245 = vpack.c.b16 %v239, %v238
    %v246 = vpack.c.b16 %v241, %v240
    %v247 = vpack.c.b16 %v243, %v242
    %v253 = vsel %vm155, %v202, 0
    %255 = vmatprep.subr.bf16.mxu0 0
    %256 = vmatpush1.bf16.msra.mxu0 %v244
    %257 = vmatprep.subr.bf16.mxu0 0
    %258 = vmatpush1.bf16.msra.mxu0 %v245
    %259 = vmatprep.subr.bf16.mxu0 0
    %260 = vmatpush1.bf16.msra.mxu0 %v246
    %261 = vmatprep.subr.bf16.mxu0 0
    %262 = vmatpush1.bf16.msra.mxu0 %v247
    %263 = vmatprep.subr.bf16.mxu0 0
    %264 = vmatpush1.bf16.msra.mxu0 0
    %265 = vmatprep.subr.bf16.mxu0 0
    %266 = vmatpush1.bf16.msra.mxu0 0
    %267 = vmatprep.subr.bf16.mxu0 0
    %268 = vmatpush1.bf16.msra.mxu0 0
    %269 = vmatprep.subr.bf16.mxu0 0
    %270 = vmatpush1.bf16.msra.mxu0 0
    %271 = vmatprep.subr.bf16.mxu0 0
    %272 = vmatpush1.bf16.msra.mxu0 0
    %273 = vmatprep.subr.bf16.mxu0 0
    %274 = vmatpush1.bf16.msra.mxu0 0
    %275 = vmatprep.subr.bf16.mxu0 0
    %276 = vmatpush1.bf16.msra.mxu0 0
    %277 = vmatprep.subr.bf16.mxu0 0
    %278 = vmatpush1.bf16.msra.mxu0 0
    %279 = vmatprep.subr.bf16.mxu0 0
    %280 = vmatpush1.bf16.msra.mxu0 0
    %281 = vmatprep.subr.bf16.mxu0 0
    %282 = vmatpush1.bf16.msra.mxu0 0
    %283 = vmatprep.subr.bf16.mxu0 0
    %284 = vmatpush1.bf16.msra.mxu0 0
    %285 = vmatprep.subr.bf16.mxu0 0
    %286 = vmatpush1.bf16.msra.mxu0 0
    %287 = vmatprep.mubr.bf16.mxu0 0
    %288 = vmatmul.mubr.bf16.gmra.mrb[0].mxu0 %v253
    %v289 = vpop.f32.mrb[0].mxu0
    %v290 = vadd.f32 %v226, %v289
    %v291 = vpop.f32.mrb[0].mxu0
    %v292 = vpop.f32.mrb[0].mxu0
    %v293 = vadd.f32 %v226, %v292
    %v294 = vpop.f32.mrb[0].mxu0
    %295 = vdwg.mxu0
    %v296 = vlaneseq
    %v297 = vand.u32 %v296, 127
    %v298 = vmax.f32 %v290, -20.0
    %v299 = vmax.f32 %v293, -20.0
    %v300 = vmin.f32 %v298, 2.0
    %v301 = vmin.f32 %v299, 2.0
    %v302 = vmul.f32 %v300, 1.442695
    %v303 = vpow.pop %v302
    %v304 = vmul.f32 %v301, 1.442695
    %v305 = vpow.pop %v304
    %vm306 = vcmp.ge.s32.totalorder %v297, 8
    %v307 = vsel %vm306, %v303, %v290
    %v308 = vsel %vm306, %v305, %v293
    %vm309 = vcmask 130048
    %310 = vst.msk [vmem:[#allocation6] sm:$0xff] %vm309, %v307
    %311 = vst.msk [vmem:[#allocation6 + $0x8] sm:$0xff] %vm309, %v308
    // Predicated region
    $region30: #{tpu_custom_call.1} parent=1 // pred_check
      _
    $region31: #{tpu_custom_call.1} parent=1 // pred_check_branch
      %313 = sbr.rel (0) target = $region33
    $region32: #{tpu_custom_call.1} parent=1 // pred_region
      %s315 = ssub.s32 128, 128
      %316 = vsyncadd [#allocation4], %s315
      %s317 = sshll.u32 [#allocation5], 4
      %s318 = int_to_ptr.vmem [resolvable:$true] %s317
      %323 = dma.vmem_to_hbm [thread:$0]  %s318, 128, %s6, [#allocation4], 64, 64, 4
    $region33: #{tpu_custom_call.1} parent=1 // pred_fallthru
      _
    // Predicated region
    $region34: #{tpu_custom_call.1} parent=1 // pred_check
      _
    $region35: #{tpu_custom_call.1} parent=1 // pred_check_branch
      %325 = sbr.rel (0) target = $region37
    $region36: #{tpu_custom_call.1} parent=1 // pred_region
      %s327 = ssub.s32 256, 256
      %328 = vsyncadd [#allocation7], %s327
      %s329 = sshll.u32 [#allocation6], 4
      %s330 = int_to_ptr.vmem [resolvable:$true] %s329
      %335 = dma.vmem_to_hbm [thread:$0]  %s330, 256, %s7, [#allocation7], 128, 128, 8
    $region37: #{tpu_custom_call.1} parent=1 // pred_fallthru
      _
    // Predicated region
    $region38: #{tpu_custom_call.1} parent=1 // pred_check
      _
    $region39: #{tpu_custom_call.1} parent=1 // pred_check_branch
      %337 = sbr.rel (0) target = $region41
    $region40: #{tpu_custom_call.1} parent=1 // pred_region
      %338 = dma.done [#allocation4], 128
    $region41: #{tpu_custom_call.1} parent=1 // pred_fallthru
      _
    // Predicated region
    $region42: #{tpu_custom_call.1} parent=1 // pred_check
      _
    $region43: #{tpu_custom_call.1} parent=1 // pred_check_branch
      %340 = sbr.rel (0) target = $region45
    $region44: #{tpu_custom_call.1} parent=1 // pred_region
      %341 = dma.done [#allocation7], 256
    $region45: #{tpu_custom_call.1} parent=1 // pred_fallthru
      _
    %342 = vsyncpa [#allocation3], 1
    %343 = vsyncpa [#allocation4], 1
    %344 = vsyncpa [#allocation7], 1

</llo_original>
